<compile_context>
chip_gen: v7x
topology: tpu7x:2x2x1
jax: 0.10.0
libtpu: 0.0.40
codegen_flags: <defaults>
</compile_context>

<pallas_src>
import functools

import jax
import jax.numpy as jnp
from jax import lax
from jax.experimental import pallas as pl
from jax.experimental.pallas import tpu as pltpu

_EPS = 1e-8  # matches torch.nn.functional.cosine_similarity default eps


def _invariant_loss_kernel(x_ref, y_ref, o_ref, *, hw, ts, needs_mask):
    """One (nb, C, ts, 128) block -> (1, 128) per-lane partial loss sums."""
    x = x_ref[...].astype(jnp.float32)            # (nb, c, ts, 128)
    y = y_ref[...].astype(jnp.float32)

    # Channel reduction over axis=1: full-vreg VPU adds, lanes/sublanes untouched.
    dot = jnp.sum(x * y, axis=1)                  # (nb, ts, 128)
    sxx = jnp.sum(x * x, axis=1)
    syy = jnp.sum(y * y, axis=1)

    eps2 = jnp.float32(_EPS) * jnp.float32(_EPS)
    # Per-norm clamp + rsqrt (EUP slot): overflow-safe, torch-equivalent eps semantics.
    inv = lax.rsqrt(jnp.maximum(sxx, eps2)) * lax.rsqrt(jnp.maximum(syy, eps2))
    loss = 1.0 - dot * inv                        # (nb, ts, 128)

    def _fold(v):                                 # (nb, ts, 128) -> (1, 128)
        return jnp.sum(jnp.sum(v, axis=0), axis=0, keepdims=True)

    if not needs_mask:
        # Tiles exactly cover H*W: no mask anywhere (static fast path).
        o_ref[...] = _fold(loss)
    else:
        ti = pl.program_id(1)
        last = pl.num_programs(1) - 1

        @pl.when(ti != last)
        def _():  # steady-state tiles: unmasked fast path
            o_ref[...] = _fold(loss)

        @pl.when(ti == last)
        def _():  # only the last spatial tile contains padded / out-of-range positions
            row = lax.broadcasted_iota(jnp.int32, (ts, 128), 0)
            lane = lax.broadcasted_iota(jnp.int32, (ts, 128), 1)
            pos = (ti * ts + row) * 128 + lane
            valid = pos < hw
            # Mask applied AFTER all arithmetic; padded lanes are never assumed zero.
            o_ref[...] = _fold(jnp.where(valid[None, :, :], loss, 0.0))


def invariant_loss(seg_1, seg_2, *, target_block_bytes=None):
    """mean over (N, H, W) of 1 - cosine_similarity(seg_1, seg_2, dim=1)."""
    assert seg_1.shape == seg_2.shape
    n, c, h, w = seg_1.shape
    hw = h * w
    dtype_bytes = jnp.dtype(seg_1.dtype).itemsize

    # --- Generation-aware block budget + scoped VMEM limit -------------------------
    try:
        vmem_cap = int(pltpu.get_tpu_info().vmem_capacity_bytes)
    except Exception:
        vmem_cap = 64 << 20  # conservative (v7x-like) fallback
    if vmem_cap > (64 << 20):          # v5e / v6e: 128 MiB physical VMEM
        default_block = 6 << 20
        vmem_limit = 64 << 20
    else:                              # v7x: 64 MiB per TensorCore
        default_block = 3 << 20
        vmem_limit = 48 << 20
    if target_block_bytes is None:
        target_block_bytes = default_block

    # --- Free NCHW view -> (n, c, rows, 128); pad lanes only if H*W isn't aligned ---
    rows = pl.cdiv(hw, 128)
    hw_pad = rows * 128
    x = seg_1.reshape(n, c, hw)
    y = seg_2.reshape(n, c, hw)
    if hw_pad != hw:
        pad = ((0, 0), (0, 0), (0, hw_pad - hw))
        x = jnp.pad(x, pad)
        y = jnp.pad(y, pad)
    x = x.reshape(n, c, rows, 128)
    y = y.reshape(n, c, rows, 128)

    # --- Spatial row-tile: full rows if they fit the budget, else a multiple of 8 ---
    row_bytes = c * 128 * dtype_bytes
    row_cap = max(1, target_block_bytes // row_bytes)
    if row_cap >= rows:
        ts = rows                        # full-row block -> one contiguous DMA per channel
    else:
        ts = max(8, (row_cap // 8) * 8)  # (8,128) block constraint
        if ts >= rows:
            ts = rows
    gt = pl.cdiv(rows, ts)

    # --- Pack batch elements per block only when full-row blocks are far under budget,
    #     while keeping >= 2 grid steps so v7x's two TensorCores both get work. -------
    nb = 1
    if gt == 1 and n > 1:
        per_batch = c * rows * 128 * dtype_bytes
        nb_cap = max(1, target_block_bytes // per_batch)
        for d in range(min(nb_cap, n), 0, -1):
            if n % d == 0 and (n // d) * gt >= 2:
                nb = d
                break
    gb = n // nb

    # --- v7x: guarantee >= 2 parallel grid steps by splitting the spatial axis -------
    if gb * gt < 2 and rows > 8:
        ts = max(8, (((rows + 1) // 2) + 7) // 8 * 8)
        gt = pl.cdiv(rows, ts)

    needs_mask = (gt * ts * 128) != hw

    kernel = functools.partial(_invariant_loss_kernel, hw=hw, ts=ts, needs_mask=needs_mask)

    out = pl.pallas_call(
        kernel,
        out_shape=jax.ShapeDtypeStruct((1, gb * gt * 128), jnp.float32),
        grid_spec=pltpu.PrefetchScalarGridSpec(
            num_scalar_prefetch=0,
            grid=(gb, gt),
            in_specs=[
                pl.BlockSpec((nb, c, ts, 128), lambda bi, ti: (bi, 0, ti, 0)),
                pl.BlockSpec((nb, c, ts, 128), lambda bi, ti: (bi, 0, ti, 0)),
            ],
            # Each grid step owns a disjoint lane-dense (1, 128) partial-sum block.
            out_specs=pl.BlockSpec((1, 128), lambda bi, ti: (0, bi * gt + ti)),
        ),
        compiler_params=pltpu.CompilerParams(
            dimension_semantics=("parallel", "parallel"),
            vmem_limit_bytes=vmem_limit,
        ),
    )(x, y)

    # Tiny final reduction + mean in the wrapper.
    return jnp.sum(out) / (n * hw)


def _reference(seg_1, seg_2):
    x = seg_1.astype(jnp.float32)
    y = seg_2.astype(jnp.float32)
    dot = jnp.sum(x * y, axis=1)
    nx = jnp.sqrt(jnp.sum(x * x, axis=1))
    ny = jnp.sqrt(jnp.sum(y * y, axis=1))
    cos = dot / jnp.maximum(nx * ny, _EPS)
    return jnp.mean(1.0 - cos)


if __name__ == "__main__":
    key = jax.random.PRNGKey(0)
    k1, k2, k3, k4 = jax.random.split(key, 4)

    # Small NCHW segmentation-like tensors, consistent with the module's forward.
    seg_1 = jax.random.normal(k1, (2, 4, 16, 16), dtype=jnp.float32)
    seg_2 = jax.random.normal(k2, (2, 4, 16, 16), dtype=jnp.float32)
    loss = invariant_loss(seg_1, seg_2)
    jax.block_until_ready(loss)
    ref = _reference(seg_1, seg_2)
    assert jnp.allclose(loss, ref, atol=1e-5, rtol=1e-5), (loss, ref)

    # Non-lane-aligned spatial size exercises the padded / masked last-tile path.
    seg_3 = jax.random.normal(k3, (3, 5, 9, 7), dtype=jnp.float32)
    seg_4 = jax.random.normal(k4, (3, 5, 9, 7), dtype=jnp.float32)
    loss2 = invariant_loss(seg_3, seg_4)
    jax.block_until_ready(loss2)
    ref2 = _reference(seg_3, seg_4)
    assert jnp.allclose(loss2, ref2, atol=1e-5, rtol=1e-5), (loss2, ref2)

    print("KERNEL_OK")
</pallas_src>

<mosaic_0001>
module attributes {stable_mosaic.version = 11 : i64} {
  func.func @_invariant_loss_kernel(%arg0: i32, %arg1: i32, %arg2: memref<1x4x2x128xf32, #tpu.memory_space<vmem>>, %arg3: memref<1x4x2x128xf32, #tpu.memory_space<vmem>>, %arg4: memref<1x128xf32, #tpu.memory_space<vmem>>) attributes {dimension_semantics = [#tpu.dimension_semantics<parallel>, #tpu.dimension_semantics<parallel>], iteration_bounds = array<i64: 2, 1>, scalar_prefetch = 0 : i64, scratch_operands = 0 : i64, tpu.core_type = #tpu.core_type<tc>, window_params = [{transform_indices = @transform_0, window_bounds = array<i64: 1, 4, 2, 128>}, {transform_indices = @transform_1, window_bounds = array<i64: 1, 4, 2, 128>}, {transform_indices = @transform_2, window_bounds = array<i64: 1, 128>}]} {
    %c0 = arith.constant 0 : index
    %c0_0 = arith.constant 0 : index
    %c0_1 = arith.constant 0 : index
    %c0_2 = arith.constant 0 : index
    %0 = vector.load %arg2[%c0, %c0_0, %c0_1, %c0_2] : memref<1x4x2x128xf32, #tpu.memory_space<vmem>>, vector<1x4x2x128xf32>
    %c0_3 = arith.constant 0 : index
    %c0_4 = arith.constant 0 : index
    %c0_5 = arith.constant 0 : index
    %c0_6 = arith.constant 0 : index
    %1 = vector.load %arg3[%c0_3, %c0_4, %c0_5, %c0_6] : memref<1x4x2x128xf32, #tpu.memory_space<vmem>>, vector<1x4x2x128xf32>
    %2 = arith.mulf %0, %1 : vector<1x4x2x128xf32>
    %cst = arith.constant dense<0.000000e+00> : vector<1x2x128xf32>
    %3 = vector.multi_reduction <add>, %2, %cst [1] : vector<1x4x2x128xf32> to vector<1x2x128xf32>
    %4 = arith.mulf %0, %0 : vector<1x4x2x128xf32>
    %cst_7 = arith.constant dense<0.000000e+00> : vector<1x2x128xf32>
    %5 = vector.multi_reduction <add>, %4, %cst_7 [1] : vector<1x4x2x128xf32> to vector<1x2x128xf32>
    %6 = arith.mulf %1, %1 : vector<1x4x2x128xf32>
    %cst_8 = arith.constant dense<0.000000e+00> : vector<1x2x128xf32>
    %7 = vector.multi_reduction <add>, %6, %cst_8 [1] : vector<1x4x2x128xf32> to vector<1x2x128xf32>
    %cst_9 = arith.constant 9.99999993E-9 : f32
    %cst_10 = arith.constant 9.99999993E-9 : f32
    %8 = arith.mulf %cst_9, %cst_10 : f32
    %9 = vector.broadcast %8 : f32 to vector<1x2x128xf32>
    %10 = arith.maximumf %5, %9 : vector<1x2x128xf32>
    %11 = math.rsqrt %10 : vector<1x2x128xf32>
    %12 = vector.broadcast %8 : f32 to vector<1x2x128xf32>
    %13 = arith.maximumf %7, %12 : vector<1x2x128xf32>
    %14 = math.rsqrt %13 : vector<1x2x128xf32>
    %15 = arith.mulf %11, %14 : vector<1x2x128xf32>
    %16 = arith.mulf %3, %15 : vector<1x2x128xf32>
    %cst_11 = arith.constant 1.000000e+00 : f32
    %17 = vector.broadcast %cst_11 : f32 to vector<1x2x128xf32>
    %18 = arith.subf %17, %16 : vector<1x2x128xf32>
    %cst_12 = arith.constant dense<0.000000e+00> : vector<2x128xf32>
    %19 = vector.multi_reduction <add>, %18, %cst_12 [0] : vector<1x2x128xf32> to vector<2x128xf32>
    %cst_13 = arith.constant dense<0.000000e+00> : vector<128xf32>
    %20 = vector.multi_reduction <add>, %19, %cst_13 [0] : vector<2x128xf32> to vector<128xf32>
    %21 = vector.shape_cast %20 : vector<128xf32> to vector<1x128xf32>
    %c0_14 = arith.constant 0 : index
    %c0_15 = arith.constant 0 : index
    %22 = vector.load %arg4[%c0_14, %c0_15] : memref<1x128xf32, #tpu.memory_space<vmem>>, vector<1x128xf32>
    tpu.vector_store %arg4[%c0_14, %c0_15], %21 {strides = array<i32>} : memref<1x128xf32, #tpu.memory_space<vmem>>, vector<1x128xf32>,
    return
  }
  func.func @transform_0(%arg0: i32, %arg1: i32) -> (i32, i32, i32, i32) {
    %c0_i32 = arith.constant 0 : i32
    %c0_i32_0 = arith.constant 0 : i32
    %c0_i32_1 = arith.constant 0 : i32
    return %arg0, %c0_i32, %arg1, %c0_i32_0 : i32, i32, i32, i32
  }
  func.func @transform_1(%arg0: i32, %arg1: i32) -> (i32, i32, i32, i32) {
    %c0_i32 = arith.constant 0 : i32
    %c0_i32_0 = arith.constant 0 : i32
    %c0_i32_1 = arith.constant 0 : i32
    return %arg0, %c0_i32, %arg1, %c0_i32_0 : i32, i32, i32, i32
  }
  func.func @transform_2(%arg0: i32, %arg1: i32) -> (i32, i32) {
    %c1_i32 = arith.constant 1 : i32
    %0 = arith.muli %arg0, %c1_i32 : i32
    %1 = arith.addi %0, %arg1 : i32
    %c0_i32 = arith.constant 0 : i32
    %c0_i32_0 = arith.constant 0 : i32
    return %c0_i32, %1 : i32, i32
  }
}

</mosaic_0001>

<llo_original>
// kernel: tpu_custom_call.1
$region0: #{tpu_custom_call.1}
  #allocation0 [shape = 'u32[]', space=smem, size = 0x4, offset = 0x4, fixed_abs, tag = 'smem constant byte address 0x4 - core index']
  #allocation1 [shape = 'u32[144,128]{1,0:T(1,128)}', space=vmem, size = 0x12000, scoped, tag = 'internal scratch']
  %s0 = inlined_call_operand.hbm [shape: f32[2,4,2,128], index: 0, kind: input, shape index: {}]
  %s1 = inlined_call_operand.hbm [shape: f32[2,4,2,128], index: 1, kind: input, shape index: {}]
  %s2 = inlined_call_operand.hbm [shape: f32[1,256], index: 2, kind: output, shape index: {}]
  %s3 = sld [smem:[#allocation0]]
  $region49: #{tpu_custom_call.1} parent=0
    _
  %s5 = ssub.s32 1, %s3
  %s6 = scalar_select 0, %s5, %s3
  $region1: #{tpu_custom_call.1} parent=0
    #allocation2 [shape = 'u8[8192]{0}', space=vmem, size = 0x2000, scoped, tag = 'input window, operand 0']
    #allocation3 [shape = 's32[2]{0}', space=sflag, size = 0x8, scoped, tag = 'scoped memory for tpu_custom_call.1']
    #allocation4 [shape = 's32[2]{0}', space=sflag, size = 0x8, scoped, tag = 'scoped memory for tpu_custom_call.1']
    #allocation5 [shape = 'u8[8192]{0}', space=vmem, size = 0x2000, scoped, tag = 'input window, operand 1']
    #allocation6 [shape = 's32[2]{0}', space=sflag, size = 0x8, scoped, tag = 'scoped memory for tpu_custom_call.1']
    #allocation7 [shape = 'u8[1024]{0}', space=vmem, size = 0x400, scoped, tag = 'output window, operand 0']
    %7 = vsyncpa [#allocation3], 0
    %s8 = scalar_lea.sflag [#allocation3], 1
    %9 = vsyncpa %s8, 0
    %10 = vsyncpa [#allocation6], 0
    %s11 = scalar_lea.sflag [#allocation6], 1
    %12 = vsyncpa %s11, 0
    %13 = vsyncpa [#allocation4], 0
    %s14 = scalar_lea.sflag [#allocation4], 1
    %15 = vsyncpa %s14, 0
    loop: start=0, step=1, limit=4
    $region2: #{tpu_custom_call.1} parent=1 // loop_pre_header
      _
    $region3: #{tpu_custom_call.1} parent=1 // loop_header
      %s17 = sphi 0, %s21
      %p18 = scmp.ge.s32.totalorder %s17, 4
      %s24 = sphi 0, %s36
      %s25 = sphi 0, %s32
      %s26 = sphi 0, %s24
      %s27 = sphi 0, %s25
      %s28 = sphi 0, %s26
      %s29 = sphi 0, %s27
      %s41 = sphi 0, %s43
      %s44 = sphi 0, %s41
      %s45 = sphi 0, %s44
      %s61 = sphi 0, %s45
      %s69 = sphi 0, %s71
      %s72 = sphi 0, %s69
      %s73 = sphi 0, %s72
      %s89 = sphi 0, %s73
      %s97 = sphi 0, %s99
      %s100 = sphi 0, %s97
      %s101 = sphi 0, %s100
      %s117 = sphi 0, %s101
    $region4: #{tpu_custom_call.1} parent=1 // loop_header_branch
      %20 = sbr.rel (%p18) target = $region8
    $region5: #{tpu_custom_call.1} parent=1 // loop_body
      %s22 = ssub.s32 %s17, 1
      %s23 = ssub.s32 %s17, 2
      %s30 = sadd.s32 1, %s25
      %p31 = scmp.ge.s32.totalorder %s30, 1
      %s32 = scalar_select %p31, 0, %s30
      %s33 = sadd.s32 1, %s24
      %s34 = scalar_select %p31, %s33, %s24
      %p35 = scmp.ge.s32.totalorder %s34, 2
      %s36 = scalar_select %p35, 0, %s34
      %s37 = ssub.s32 %s24, %s36
      %s38 = ssub.s32 %s25, %s32
      %s39 = sor.u32 %s37, %s38
      %p40 = scmp.eq.s32.totalorder %s39, 0
      %s42 = sadd.s32 %s41, 1
      %s43 = scalar_select %p40, %s41, %s42
      %p46 = pneg %p40
      %p47 = scmp.eq.s32.totalorder %s17, 1
      %p48 = por %p46, %p47
      %p49 = scmp.ne.s32.totalorder %s41, %s44
      %p50 = scmp.eq.s32.totalorder %s17, 0
      %p51 = por %p49, %p50
      %p52 = scmp.ne.s32.totalorder %s41, %s44
      %p53 = scmp.eq.s32.totalorder %s22, 1
      %p54 = por %p52, %p53
      %p55 = scmp.ne.s32.totalorder %s44, %s45
      %p56 = scmp.eq.s32.totalorder %s22, 0
      %p57 = por %p55, %p56
      %p58 = scmp.ne.s32.totalorder %s44, %s45
      %p59 = scmp.eq.s32.totalorder %s23, 1
      %p60 = por %p58, %p59
      %p62 = scmp.ne.s32.totalorder %s45, %s61
      %p63 = scmp.eq.s32.totalorder %s23, 0
      %p64 = por %p62, %p63
      %s65 = ssub.s32 %s24, %s36
      %s66 = ssub.s32 %s25, %s32
      %s67 = sor.u32 %s65, %s66
      %p68 = scmp.eq.s32.totalorder %s67, 0
      %s70 = sadd.s32 %s69, 1
      %s71 = scalar_select %p68, %s69, %s70
      %p74 = pneg %p68
      %p75 = scmp.eq.s32.totalorder %s17, 1
      %p76 = por %p74, %p75
      %p77 = scmp.ne.s32.totalorder %s69, %s72
      %p78 = scmp.eq.s32.totalorder %s17, 0
      %p79 = por %p77, %p78
      %p80 = scmp.ne.s32.totalorder %s69, %s72
      %p81 = scmp.eq.s32.totalorder %s22, 1
      %p82 = por %p80, %p81
      %p83 = scmp.ne.s32.totalorder %s72, %s73
      %p84 = scmp.eq.s32.totalorder %s22, 0
      %p85 = por %p83, %p84
      %p86 = scmp.ne.s32.totalorder %s72, %s73
      %p87 = scmp.eq.s32.totalorder %s23, 1
      %p88 = por %p86, %p87
      %p90 = scmp.ne.s32.totalorder %s73, %s89
      %p91 = scmp.eq.s32.totalorder %s23, 0
      %p92 = por %p90, %p91
      %s93 = sadd.s32 %s24, %s25
      %s94 = sadd.s32 %s36, %s32
      %s95 = ssub.s32 %s93, %s94
      %p96 = scmp.eq.s32.totalorder %s95, 0
      %s98 = sadd.s32 %s97, 1
      %s99 = scalar_select %p96, %s97, %s98
      %p102 = pneg %p96
      %p103 = scmp.eq.s32.totalorder %s17, 1
      %p104 = por %p102, %p103
      %p105 = scmp.ne.s32.totalorder %s97, %s100
      %p106 = scmp.eq.s32.totalorder %s17, 0
      %p107 = por %p105, %p106
      %p108 = scmp.ne.s32.totalorder %s97, %s100
      %p109 = scmp.eq.s32.totalorder %s22, 1
      %p110 = por %p108, %p109
      %p111 = scmp.ne.s32.totalorder %s100, %s101
      %p112 = scmp.eq.s32.totalorder %s22, 0
      %p113 = por %p111, %p112
      %p114 = scmp.ne.s32.totalorder %s100, %s101
      %p115 = scmp.eq.s32.totalorder %s23, 1
      %p116 = por %p114, %p115
      %p118 = scmp.ne.s32.totalorder %s101, %s117
      %p119 = scmp.eq.s32.totalorder %s23, 0
      %p120 = por %p118, %p119
      %p121 = scmp.le.s32.totalorder 1, %s17
      %p122 = scmp.lt.s32.totalorder %s17, 3
      %p123 = pnand %p121, %p122
      %p124 = pneg %p123
      // Predicated region
      $region9: #{tpu_custom_call.1} parent=5 // pred_check
        _
      $region10: #{tpu_custom_call.1} parent=5 // pred_check_branch
        %126 = sbr.rel (%p123) target = $region12
      $region11: #{tpu_custom_call.1} parent=5 // pred_region
        %s127 = ssub.s32 %s17, 1
      $region12: #{tpu_custom_call.1} parent=5 // pred_fallthru
        _
      %p128 = scmp.lt.s32.totalorder %s17, 2
      // Predicated region
      $region13: #{tpu_custom_call.1} parent=5 // pred_check
        %p129 = pneg %p128
      $region14: #{tpu_custom_call.1} parent=5 // pred_check_branch
        %131 = sbr.rel (%p129) target = $region16
      $region15: #{tpu_custom_call.1} parent=5 // pred_region
        // Predicated region
        $region17: #{tpu_custom_call.1} parent=15 // pred_check
          %p132 = pneg %p51
        $region18: #{tpu_custom_call.1} parent=15 // pred_check_branch
          %134 = sbr.rel (%p132) target = $region20
        $region19: #{tpu_custom_call.1} parent=15 // pred_region
          %s135 = sand.u32 %s41, 1
          %s136 = scalar_lea.sflag [#allocation3], %s135
          %s137 = sand.u32 %s41, 1
          %s138 = smul.addr %s137, 8
          %s139 = scalar_lea.vmem [#allocation2], %s138
          %s141 = ssub.s32 128, 128
          %142 = vsyncadd %s136, %s141
          %s143 = smul.addr %s24, 4
          %s144 = sadd.s32 %s25, %s143
          %s145 = smul.addr %s144, 32
          %s146 = scalar_lea.hbm %s0, %s145
          %s147 = sshll.u32 %s139, 4
          %s148 = int_to_ptr.vmem [resolvable:$true] %s147
          %153 = dma.hbm_to_vmem [thread:$0]  %s146, 128, %s148, %s136, 32, 32, 2
        $region20: #{tpu_custom_call.1} parent=15 // pred_fallthru
          _
        // Predicated region
        $region21: #{tpu_custom_call.1} parent=15 // pred_check
          %p154 = pneg %p79
        $region22: #{tpu_custom_call.1} parent=15 // pred_check_branch
          %156 = sbr.rel (%p154) target = $region24
        $region23: #{tpu_custom_call.1} parent=15 // pred_region
          %s157 = sand.u32 %s69, 1
          %s158 = scalar_lea.sflag [#allocation6], %s157
          %s159 = sand.u32 %s69, 1
          %s160 = smul.addr %s159, 8
          %s161 = scalar_lea.vmem [#allocation5], %s160
          %s163 = ssub.s32 128, 128
          %164 = vsyncadd %s158, %s163
          %s165 = smul.addr %s24, 4
          %s166 = sadd.s32 %s25, %s165
          %s167 = smul.addr %s166, 32
          %s168 = scalar_lea.hbm %s1, %s167
          %s169 = sshll.u32 %s161, 4
          %s170 = int_to_ptr.vmem [resolvable:$true] %s169
          %175 = dma.hbm_to_vmem [thread:$0]  %s168, 128, %s170, %s158, 32, 32, 2
        $region24: #{tpu_custom_call.1} parent=15 // pred_fallthru
          _
      $region16: #{tpu_custom_call.1} parent=5 // pred_fallthru
        _
      %p176 = scmp.le.s32.totalorder 1, %s17
      %p177 = scmp.lt.s32.totalorder %s17, 3
      %p178 = pnand %p176, %p177
      %p179 = pneg %p178
      // Predicated region
      $region25: #{tpu_custom_call.1} parent=5 // pred_check
        _
      $region26: #{tpu_custom_call.1} parent=5 // pred_check_branch
        %181 = sbr.rel (%p178) target = $region28
      $region27: #{tpu_custom_call.1} parent=5 // pred_region
        %s182 = ssub.s32 %s17, 1
        %s183 = sand.u32 %s44, 1
        %s184 = scalar_lea.sflag [#allocation3], %s183
        %s185 = sand.u32 %s44, 1
        %s186 = smul.addr %s185, 8
        %s187 = scalar_lea.vmem [#allocation2], %s186
        // Predicated region
        $region29: #{tpu_custom_call.1} parent=27 // pred_check
          %p188 = pneg %p57
        $region30: #{tpu_custom_call.1} parent=27 // pred_check_branch
          %190 = sbr.rel (%p188) target = $region32
        $region31: #{tpu_custom_call.1} parent=27 // pred_region
          %191 = dma.done %s184, 128
        $region32: #{tpu_custom_call.1} parent=27 // pred_fallthru
          _
        %s192 = sand.u32 %s72, 1
        %s193 = scalar_lea.sflag [#allocation6], %s192
        %s194 = sand.u32 %s72, 1
        %s195 = smul.addr %s194, 8
        %s196 = scalar_lea.vmem [#allocation5], %s195
        // Predicated region
        $region33: #{tpu_custom_call.1} parent=27 // pred_check
          %p197 = pneg %p85
        $region34: #{tpu_custom_call.1} parent=27 // pred_check_branch
          %199 = sbr.rel (%p197) target = $region36
        $region35: #{tpu_custom_call.1} parent=27 // pred_region
          %200 = dma.done %s193, 128
        $region36: #{tpu_custom_call.1} parent=27 // pred_fallthru
          _
        %s201 = sand.u32 %s44, 1
        %s202 = scalar_lea.sflag [#allocation3], %s201
        %s203 = sand.u32 %s44, 1
        %s204 = smul.addr %s203, 8
        %s205 = scalar_lea.vmem [#allocation2], %s204
        %p206 = pneg %p57
        %p207 = pneg %p54
        %s208 = sand.u32 %s72, 1
        %s209 = scalar_lea.sflag [#allocation6], %s208
        %s210 = sand.u32 %s72, 1
        %s211 = smul.addr %s210, 8
        %s212 = scalar_lea.vmem [#allocation5], %s211
        %p213 = pneg %p85
        %p214 = pneg %p82
        %p215 = pneg %p113
        %p216 = pneg %p110
        %s217 = sand.u32 %s100, 1
        %s218 = scalar_lea.sflag [#allocation4], %s217
        %s219 = sand.u32 %s100, 1
        %s220 = scalar_lea.vmem [#allocation7], %s219
        %s221 = sadd.s32 %s26, %s27
        %v222 = vld [vmem:[%s187] sm:$0x3]
        %v223 = vld [vmem:[%s187 + $0x2] sm:$0x3]
        %v224 = vld [vmem:[%s187 + $0x4] sm:$0x3]
        %v225 = vld [vmem:[%s187 + $0x6] sm:$0x3]
        %v226 = vld [vmem:[%s196] sm:$0x3]
        %v227 = vld [vmem:[%s196 + $0x2] sm:$0x3]
        %v228 = vld [vmem:[%s196 + $0x4] sm:$0x3]
        %v229 = vld [vmem:[%s196 + $0x6] sm:$0x3]
        %v230 = vmul.f32 %v222, %v226
        %v231 = vmul.f32 %v223, %v227
        %v232 = vmul.f32 %v224, %v228
        %v233 = vmul.f32 %v225, %v229
        %vm234 = vcmask 1041408
        %v235 = vsel %vm234, %v230, 0.0
        %v236 = vsel %vm234, %v231, 0.0
        %v237 = vadd.f32 %v235, %v236
        %v238 = vsel %vm234, %v232, 0.0
        %v239 = vadd.f32 %v237, %v238
        %v240 = vsel %vm234, %v233, 0.0
        %v241 = vadd.f32 %v239, %v240
        %v242 = vmul.f32 %v222, %v222
        %v243 = vmul.f32 %v223, %v223
        %v244 = vmul.f32 %v224, %v224
        %v245 = vmul.f32 %v225, %v225
        %v246 = vsel %vm234, %v242, 0.0
        %v247 = vsel %vm234, %v243, 0.0
        %v248 = vadd.f32 %v246, %v247
        %v249 = vsel %vm234, %v244, 0.0
        %v250 = vadd.f32 %v248, %v249
        %v251 = vsel %vm234, %v245, 0.0
        %v252 = vadd.f32 %v250, %v251
        %v253 = vmul.f32 %v226, %v226
        %v254 = vmul.f32 %v227, %v227
        %v255 = vmul.f32 %v228, %v228
        %v256 = vmul.f32 %v229, %v229
        %v257 = vsel %vm234, %v253, 0.0
        %v258 = vsel %vm234, %v254, 0.0
        %v259 = vadd.f32 %v257, %v258
        %v260 = vsel %vm234, %v255, 0.0
        %v261 = vadd.f32 %v259, %v260
        %v262 = vsel %vm234, %v256, 0.0
        %v263 = vadd.f32 %v261, %v262
        %v264 = vmax.f32 %v252, 1e-16
        %v265 = vrsqrt.pop %v264
        %v266 = vmax.f32 %v263, 1e-16
        %v267 = vrsqrt.pop %v266
        %v268 = vmul.f32 %v265, %v267
        %v269 = vmul.f32 %v241, %v268
        %v270 = vsub.f32 1.0, %v269
        %v271 = vadd.f32 %v270, 0.0
        %v272 = vsel %vm234, %v271, 0.0
        %v273 = vrot.slane %v272, 4
        %v274 = vadd.f32 %v272, %v273
        %v275 = vrot.slane %v274, 2
        %v276 = vadd.f32 %v274, %v275
        %v277 = vrot.slane %v276, 1
        %v278 = vadd.f32 %v276, %v277
        %279 = vst [vmem:[%s220] sm:$0x1] %v278
        %s280 = sand.u32 %s100, 1
        %s281 = scalar_lea.sflag [#allocation4], %s280
        %s282 = sand.u32 %s100, 1
        %s283 = scalar_lea.vmem [#allocation7], %s282
        // Predicated region
        $region37: #{tpu_custom_call.1} parent=27 // pred_check
          %p284 = pneg %p110
        $region38: #{tpu_custom_call.1} parent=27 // pred_check_branch
          %286 = sbr.rel (%p284) target = $region40
        $region39: #{tpu_custom_call.1} parent=27 // pred_region
          %s287 = sadd.s32 %s26, %s27
          %s289 = ssub.s32 16, 16
          %290 = vsyncadd %s281, %s289
          %s291 = smul.addr %s287, 16
          %s292 = scalar_lea.hbm %s2, %s291
          %s294 = sshll.u32 %s283, 4
          %s295 = int_to_ptr.vmem [resolvable:$true] %s294
          %297 = dma.vmem_to_hbm [thread:$0]  %s295, 16, %s292, %s281
        $region40: #{tpu_custom_call.1} parent=27 // pred_fallthru
          _
      $region28: #{tpu_custom_call.1} parent=5 // pred_fallthru
        _
      %p298 = scmp.le.s32.totalorder 2, %s17
      // Predicated region
      $region41: #{tpu_custom_call.1} parent=5 // pred_check
        %p299 = pneg %p298
      $region42: #{tpu_custom_call.1} parent=5 // pred_check_branch
        %301 = sbr.rel (%p299) target = $region44
      $region43: #{tpu_custom_call.1} parent=5 // pred_region
        %s302 = ssub.s32 %s17, 2
        // Predicated region
        $region45: #{tpu_custom_call.1} parent=43 // pred_check
          %p303 = pneg %p116
        $region46: #{tpu_custom_call.1} parent=43 // pred_check_branch
          %305 = sbr.rel (%p303) target = $region48
        $region47: #{tpu_custom_call.1} parent=43 // pred_region
          %s306 = sand.u32 %s101, 1
          %s307 = scalar_lea.sflag [#allocation4], %s306
          %s308 = sand.u32 %s101, 1
          %s309 = scalar_lea.vmem [#allocation7], %s308
          %310 = dma.done %s307, 16
        $region48: #{tpu_custom_call.1} parent=43 // pred_fallthru
          _
      $region44: #{tpu_custom_call.1} parent=5 // pred_fallthru
        _
    $region6: #{tpu_custom_call.1} parent=1 // loop_footer
      %s21 = sadd.s32 1, %s17
    $region7: #{tpu_custom_call.1} parent=1 // loop_footer_branch
      %16 = sbr.rel target = $region3
    $region8: #{tpu_custom_call.1} parent=1 // loop_exit
      _
    %311 = vsyncpa [#allocation3], 1
    %s312 = scalar_lea.sflag [#allocation3], 1
    %313 = vsyncpa %s312, 1
    %314 = vsyncpa [#allocation6], 1
    %s315 = scalar_lea.sflag [#allocation6], 1
    %316 = vsyncpa %s315, 1
    %317 = vsyncpa [#allocation4], 1
    %s318 = scalar_lea.sflag [#allocation4], 1
    %319 = vsyncpa %s318, 1

</llo_original>
